<compile_context>
chip_gen: v7x
topology: tpu7x:2x2x1
jax: 0.10.0
libtpu: 0.0.40
codegen_flags: <defaults>
</compile_context>

<pallas_src>
import jax
import jax.numpy as jnp
from jax.experimental import pallas as pl
from jax.experimental.pallas import tpu as pltpu


def _norm_kernel(sb_ref, x_ref, o_ref):
    # sb_ref: (tr, 2) f32 tile -> column 0 = 1/sigma, column 1 = -mean/sigma.
    # x_ref / o_ref: (tr, tl) tiles.
    scale = sb_ref[:, 0:1]          # (tr, 1), broadcast along lanes
    bias = sb_ref[:, 1:2]           # (tr, 1)
    x = x_ref[...].astype(jnp.float32)
    o_ref[...] = (x * scale + bias).astype(o_ref.dtype)


def _sublane_quantum(dtype):
    # Sub-32-bit dtypes pack along sublanes: 8 rows (f32), 16 (bf16/f16),
    # 32 (int8/fp8) per native tile.
    itemsize = jnp.dtype(dtype).itemsize
    return max(8, 32 // max(itemsize, 1))


def _select_tiles(R, L, itemsize, sub_q, budget_bytes):
    """Pick (tr, tl) so that one x block is ~budget_bytes.

    tl is chosen first (full row when possible, else a 128-multiple), then tr
    from the remaining budget (a multiple of sub_q, or the full extent).
    Tiles need not divide the array: the grid uses cdiv and Pallas masks the
    edge blocks.
    """
    # Lane tile: prefer the whole row for long contiguous DMA bursts.
    if L <= 128:
        tl = L                                  # full extent (always legal)
    else:
        max_lane_elems = max(128, budget_bytes // (sub_q * itemsize))
        if L <= max_lane_elems:
            tl = L                              # full extent
        else:
            tl = (max_lane_elems // 128) * 128  # 128-aligned cap

    # Row tile from the remaining budget.
    if R <= sub_q:
        tr = R                                  # full extent (always legal)
    else:
        tr = max(sub_q, (budget_bytes // (tl * itemsize)) // sub_q * sub_q)
        if tr >= R:
            tr = R                              # full extent
    return tr, tl


def normalization_forward(x, mean, sigma):
    """x: (N, C, H, W); mean, sigma: length-1 or length-C (C in {1, 3}) vectors."""
    N, C, H, W = x.shape

    mean = jnp.asarray(mean, jnp.float32).reshape(-1)
    sigma = jnp.asarray(sigma, jnp.float32).reshape(-1)
    if mean.shape[0] == 1:
        mean = jnp.broadcast_to(mean, (C,))
        sigma = jnp.broadcast_to(sigma, (C,))

    # FMA form: (x - mean) / sigma == x * (1/sigma) + (-mean/sigma).
    # Kept in f32 end-to-end; only the output is cast to x.dtype.
    scale = 1.0 / sigma
    bias = -mean * scale
    sb = jnp.stack([scale, bias], axis=-1)              # (C, 2) f32
    R, L = N * C, H * W
    sb_rows = jnp.tile(sb, (N, 1))                      # (R, 2) f32

    x2 = x.reshape(R, L)

    itemsize = jnp.dtype(x.dtype).itemsize
    sub_q = _sublane_quantum(x.dtype)
    # ~8 MiB x blocks: per-step overhead (~0.35 us) drops to a few percent of
    # the HBM stream time; double-buffered in+out stays ~32 MiB.
    budget_bytes = 8 * 1024 * 1024
    tr, tl = _select_tiles(R, L, itemsize, sub_q, budget_bytes)

    grid = (pl.cdiv(R, tr), pl.cdiv(L, tl))

    out2 = pl.pallas_call(
        _norm_kernel,
        out_shape=jax.ShapeDtypeStruct((R, L), x.dtype),
        grid=grid,
        in_specs=[
            pl.BlockSpec((tr, 2), lambda i, j: (i, 0)),   # packed scale/bias rows
            pl.BlockSpec((tr, tl), lambda i, j: (i, j)),  # x slab
        ],
        out_specs=pl.BlockSpec((tr, tl), lambda i, j: (i, j)),
        compiler_params=pltpu.CompilerParams(
            # Pure elementwise stream: both axes shardable across TensorCores.
            dimension_semantics=("parallel", "parallel"),
            vmem_limit_bytes=48 * 1024 * 1024,
        ),
    )(sb_rows, x2)

    return out2.reshape(N, C, H, W)


if __name__ == "__main__":
    # Classic ImageNet constants (C == 3, matching the module's 3-channel path).
    mean = jnp.array([0.485, 0.456, 0.406], dtype=jnp.float32)
    sigma = jnp.array([0.229, 0.224, 0.225], dtype=jnp.float32)

    key = jax.random.PRNGKey(0)
    x = jax.random.uniform(key, (2, 3, 16, 16), dtype=jnp.float32)

    out = normalization_forward(x, mean, sigma)
    out = jax.block_until_ready(out)

    # Reference: plain JAX broadcast, same semantics as the torch module.
    ref = (x - mean.reshape(1, 3, 1, 1)) / sigma.reshape(1, 3, 1, 1)
    assert out.shape == x.shape and out.dtype == x.dtype
    assert jnp.allclose(out, ref, atol=1e-5, rtol=1e-5)

    print("KERNEL_OK")
</pallas_src>

<mosaic_0001>
module attributes {stable_mosaic.version = 11 : i64} {
  func.func @_norm_kernel(%arg0: i32, %arg1: i32, %arg2: memref<6x2xf32, #tpu.memory_space<vmem>>, %arg3: memref<6x256xf32, #tpu.memory_space<vmem>>, %arg4: memref<6x256xf32, #tpu.memory_space<vmem>>) attributes {dimension_semantics = [#tpu.dimension_semantics<parallel>, #tpu.dimension_semantics<parallel>], iteration_bounds = array<i64: 1, 1>, scalar_prefetch = 0 : i64, scratch_operands = 0 : i64, tpu.core_type = #tpu.core_type<tc>, window_params = [{transform_indices = @transform_0, window_bounds = array<i64: 6, 2>}, {transform_indices = @transform_1, window_bounds = array<i64: 6, 256>}, {transform_indices = @transform_2, window_bounds = array<i64: 6, 256>}]} {
    %c0 = arith.constant 0 : index
    %c0_0 = arith.constant 0 : index
    %0 = vector.load %arg2[%c0, %c0_0] : memref<6x2xf32, #tpu.memory_space<vmem>>, vector<6x1xf32>
    %c0_1 = arith.constant 0 : index
    %c1 = arith.constant 1 : index
    %1 = vector.load %arg2[%c0_1, %c1] : memref<6x2xf32, #tpu.memory_space<vmem>>, vector<6x1xf32>
    %c0_2 = arith.constant 0 : index
    %c0_3 = arith.constant 0 : index
    %2 = vector.load %arg3[%c0_2, %c0_3] : memref<6x256xf32, #tpu.memory_space<vmem>>, vector<6x256xf32>
    %3 = vector.broadcast %0 : vector<6x1xf32> to vector<6x256xf32>
    %4 = arith.mulf %2, %3 : vector<6x256xf32>
    %5 = vector.broadcast %1 : vector<6x1xf32> to vector<6x256xf32>
    %6 = arith.addf %4, %5 : vector<6x256xf32>
    %c0_4 = arith.constant 0 : index
    %c0_5 = arith.constant 0 : index
    %7 = vector.load %arg4[%c0_4, %c0_5] : memref<6x256xf32, #tpu.memory_space<vmem>>, vector<6x256xf32>
    tpu.vector_store %arg4[%c0_4, %c0_5], %6 {strides = array<i32>} : memref<6x256xf32, #tpu.memory_space<vmem>>, vector<6x256xf32>,
    return
  }
  func.func @transform_0(%arg0: i32, %arg1: i32) -> (i32, i32) {
    %c0_i32 = arith.constant 0 : i32
    %c0_i32_0 = arith.constant 0 : i32
    return %arg0, %c0_i32 : i32, i32
  }
  func.func @transform_1(%arg0: i32, %arg1: i32) -> (i32, i32) {
    %c0_i32 = arith.constant 0 : i32
    return %arg0, %arg1 : i32, i32
  }
  func.func @transform_2(%arg0: i32, %arg1: i32) -> (i32, i32) {
    %c0_i32 = arith.constant 0 : i32
    return %arg0, %arg1 : i32, i32
  }
}

</mosaic_0001>

<llo_original>
// kernel: tpu_custom_call.1
$region0: #{tpu_custom_call.1}
  #allocation0 [shape = 'u32[]', space=smem, size = 0x4, offset = 0x4, fixed_abs, tag = 'smem constant byte address 0x4 - core index']
  #allocation1 [shape = 'u32[144,128]{1,0:T(1,128)}', space=vmem, size = 0x12000, scoped, tag = 'internal scratch']
  %s0 = inlined_call_operand.vmem [shape: f32[6,2], index: 0, kind: input, shape index: {}]
  %s1 = inlined_call_operand.hbm [shape: f32[6,256], index: 1, kind: input, shape index: {}]
  %s2 = inlined_call_operand.hbm [shape: f32[6,256], index: 2, kind: output, shape index: {}]
  %s3 = sld [smem:[#allocation0]]
  $region22: #{tpu_custom_call.1} parent=0
    _
  %s5 = ssub.s32 1, %s3
  %s6 = scalar_select 0, %s5, %s3
  $region1: #{tpu_custom_call.1} parent=0
    #allocation2 [shape = 'u8[8192]{0}', space=vmem, size = 0x2000, scoped, tag = 'input window, operand 1, single buffered']
    #allocation3 [shape = 's32[1]{0}', space=sflag, size = 0x4, scoped, tag = 'scoped memory for tpu_custom_call.1']
    #allocation4 [shape = 's32[1]{0}', space=sflag, size = 0x4, scoped, tag = 'scoped memory for tpu_custom_call.1']
    #allocation5 [shape = 'u8[8192]{0}', space=vmem, size = 0x2000, scoped, tag = 'output window, operand 0, single buffered']
    %7 = vsyncpa [#allocation3], 0
    %8 = vsyncpa [#allocation4], 0
    // Predicated region
    $region2: #{tpu_custom_call.1} parent=1 // pred_check
      _
    $region3: #{tpu_custom_call.1} parent=1 // pred_check_branch
      %10 = sbr.rel (0) target = $region5
    $region4: #{tpu_custom_call.1} parent=1 // pred_region
      _
    $region5: #{tpu_custom_call.1} parent=1 // pred_fallthru
      _
    // Predicated region
    $region6: #{tpu_custom_call.1} parent=1 // pred_check
      _
    $region7: #{tpu_custom_call.1} parent=1 // pred_check_branch
      %12 = sbr.rel (0) target = $region9
    $region8: #{tpu_custom_call.1} parent=1 // pred_region
      %s14 = ssub.s32 256, 256
      %15 = vsyncadd [#allocation3], %s14
      %s17 = sshll.u32 [#allocation2], 4
      %s18 = int_to_ptr.vmem [resolvable:$true] %s17
      %20 = dma.hbm_to_vmem [thread:$0]  %s1, 256, %s18, [#allocation3]
    $region9: #{tpu_custom_call.1} parent=1 // pred_fallthru
      _
    // Predicated region
    $region10: #{tpu_custom_call.1} parent=1 // pred_check
      _
    $region11: #{tpu_custom_call.1} parent=1 // pred_check_branch
      %22 = sbr.rel (0) target = $region13
    $region12: #{tpu_custom_call.1} parent=1 // pred_region
      %23 = dma.done [#allocation3], 256
    $region13: #{tpu_custom_call.1} parent=1 // pred_fallthru
      _
    %v24 = vld [vmem:[%s0] sm:$0x3f]
    %v25 = vld [vmem:[#allocation2] sm:$0x3f]
    %v26 = vld [vmem:[#allocation2 + $0x8] sm:$0x3f]
    %28 = vset.pattern.permute.xlu0 0
    %29 = vperm.xlu0 %28, %v24
    %v30 = vpop.permute.xlu0 %29
    %v32 = vmul.f32 %v25, %v30
    %v33 = vmul.f32 %v26, %v30
    %34 = vset.pattern.permute.xlu0 1
    %35 = vperm.xlu0 %34, %v24
    %v36 = vpop.permute.xlu0 %35
    %v38 = vadd.f32 %v32, %v36
    %v39 = vadd.f32 %v33, %v36
    %40 = vst [vmem:[#allocation5] sm:$0x3f] %v38
    %41 = vst [vmem:[#allocation5 + $0x8] sm:$0x3f] %v39
    // Predicated region
    $region14: #{tpu_custom_call.1} parent=1 // pred_check
      _
    $region15: #{tpu_custom_call.1} parent=1 // pred_check_branch
      %43 = sbr.rel (0) target = $region17
    $region16: #{tpu_custom_call.1} parent=1 // pred_region
      %s45 = ssub.s32 256, 256
      %46 = vsyncadd [#allocation4], %s45
      %s48 = sshll.u32 [#allocation5], 4
      %s49 = int_to_ptr.vmem [resolvable:$true] %s48
      %51 = dma.vmem_to_hbm [thread:$0]  %s49, 256, %s2, [#allocation4]
    $region17: #{tpu_custom_call.1} parent=1 // pred_fallthru
      _
    // Predicated region
    $region18: #{tpu_custom_call.1} parent=1 // pred_check
      _
    $region19: #{tpu_custom_call.1} parent=1 // pred_check_branch
      %53 = sbr.rel (0) target = $region21
    $region20: #{tpu_custom_call.1} parent=1 // pred_region
      %54 = dma.done [#allocation4], 256
    $region21: #{tpu_custom_call.1} parent=1 // pred_fallthru
      _
    %55 = vsyncpa [#allocation3], 1
    %56 = vsyncpa [#allocation4], 1

</llo_original>
